<compile_context>
chip_gen: v6e
topology: v6e:2x2x1
jax: 0.10.0
libtpu: 0.0.40
codegen_flags: <defaults>
</compile_context>

<pallas_src>
import functools

import jax
import jax.numpy as jnp
from jax.experimental import pallas as pl
from jax.experimental.pallas import tpu as pltpu


def _round_up(n, m):
    return ((n + m - 1) // m) * m


def _classifier_kernel(x_ref, w1_ref, w2_ref, bias_ref, o_ref, *, hidden, num_classes):
    # fc1: [TB, F]bf16 @ [F, H]bf16 -> f32 accumulate on the MXU.
    h = jnp.dot(x_ref[...], w1_ref[...], preferred_element_type=jnp.float32)
    h = h + bias_ref[0:1, :hidden]                     # f32 bias broadcast (1, H)
    h = jnp.tanh(h)                                    # f32 (keeps v5e happy; EUP op)

    # fc2: [TB, H]bf16 @ [H, C]bf16 -> f32 accumulate.
    logits = jnp.dot(h.astype(jnp.bfloat16), w2_ref[...],
                     preferred_element_type=jnp.float32)
    logits = logits + bias_ref[1:2, :num_classes]      # f32 bias broadcast (1, C)

    # Softmax over the class axis (nn.Softmax legacy default dim -> dim=1 for 2-D input).
    m = jnp.max(logits, axis=-1, keepdims=True)
    e = jnp.exp(logits - m)
    denom = jnp.sum(e, axis=-1, keepdims=True)
    # Exact reciprocal on the otherwise-idle EUP slot (approx=False keeps f32 accuracy).
    o_ref[...] = (e * pl.reciprocal(denom, approx=False)).astype(o_ref.dtype)


def roberta_classifier_forward(x, w1, b1, w2, b2, *, max_block_batch=256):
    """x: [B, 768] f32; w1: [H, 768], b1: [H], w2: [C, H], b2: [C] (nn.Linear layout)."""
    B, F = x.shape
    H, F2 = w1.shape
    C, H2 = w2.shape
    assert F == F2 and H == H2

    # bf16 inputs: halves HBM->VMEM traffic (dominated by w1) and is MXU-native.
    x_bf = x.astype(jnp.bfloat16)
    w1_t = w1.T.astype(jnp.bfloat16)   # [F, H]
    w2_t = w2.T.astype(jnp.bfloat16)   # [H, C]

    # Fuse both biases into one VMEM-resident f32 array -> one DMA instead of two.
    HP = max(H, C)
    bias = jnp.zeros((2, HP), jnp.float32)
    bias = bias.at[0, :H].set(b1.astype(jnp.float32))
    bias = bias.at[1, :C].set(b2.astype(jnp.float32))

    # Batch tiling: pick TB as a multiple of 16 (bf16 sublane packing); pad B up to a
    # multiple of TB so every block is full.  Weights stay resident across iterations.
    tb = min(max_block_batch, _round_up(B, 16))
    b_pad = _round_up(B, tb)
    if b_pad != B:
        x_bf = jnp.pad(x_bf, ((0, b_pad - B), (0, 0)))
    grid = (b_pad // tb,)

    kernel = functools.partial(_classifier_kernel, hidden=H, num_classes=C)

    cost = pl.CostEstimate(
        flops=2 * b_pad * (F * H + H * C),
        transcendentals=b_pad * (H + C),                   # tanh + exp
        bytes_accessed=(b_pad * F + F * H + H * C) * 2     # bf16 activations + weights
                       + 2 * HP * 4                        # fused bias (f32)
                       + b_pad * C * 4,                    # f32 output
    )

    out = pl.pallas_call(
        kernel,
        out_shape=jax.ShapeDtypeStruct((b_pad, C), jnp.float32),
        grid_spec=pltpu.PrefetchScalarGridSpec(
            num_scalar_prefetch=0,
            grid=grid,
            in_specs=[
                pl.BlockSpec((tb, F), lambda i: (i, 0)),   # activations: streamed
                pl.BlockSpec((F, H), lambda i: (0, 0)),    # w1: VMEM-resident
                pl.BlockSpec((H, C), lambda i: (0, 0)),    # w2: VMEM-resident
                pl.BlockSpec((2, HP), lambda i: (0, 0)),   # fused biases: VMEM-resident
            ],
            out_specs=pl.BlockSpec((tb, C), lambda i: (i, 0)),
        ),
        compiler_params=pltpu.CompilerParams(
            # Batch tiles are independent -> lets v7x shard the grid across both TCs.
            dimension_semantics=("parallel",),
        ),
        cost_estimate=cost,
    )(x_bf, w1_t, w2_t, bias)

    return out[:B] if b_pad != B else out


def _reference(x, w1, b1, w2, b2):
    # Mirrors the kernel numerics: bf16 matmul inputs, f32 accumulate + f32 epilogue.
    h = jnp.dot(x.astype(jnp.bfloat16), w1.T.astype(jnp.bfloat16),
                preferred_element_type=jnp.float32) + b1.astype(jnp.float32)
    h = jnp.tanh(h)
    logits = jnp.dot(h.astype(jnp.bfloat16), w2.T.astype(jnp.bfloat16),
                     preferred_element_type=jnp.float32) + b2.astype(jnp.float32)
    return jax.nn.softmax(logits, axis=-1)


if __name__ == "__main__":
    # TODO(synk): the RobertaWrapper (torch.hub 'roberta.base' feature extraction /
    # encode) is an external pretrained encoder with no in-script Pallas equivalent;
    # forward() only consumes 768-dim features, which is what this kernel implements.
    batch = 8
    in_features = 768
    hidden = 128
    num_classes = 4

    key = jax.random.PRNGKey(0)
    kx, kw1, kb1, kw2, kb2 = jax.random.split(key, 5)

    x = jax.random.normal(kx, (batch, in_features), dtype=jnp.float32)
    # nn.Linear stores weight as [out, in].
    w1 = jax.random.normal(kw1, (hidden, in_features), dtype=jnp.float32) * 0.02
    b1 = jax.random.normal(kb1, (hidden,), dtype=jnp.float32) * 0.02
    w2 = jax.random.normal(kw2, (num_classes, hidden), dtype=jnp.float32) * 0.02
    b2 = jax.random.normal(kb2, (num_classes,), dtype=jnp.float32) * 0.02

    out = roberta_classifier_forward(x, w1, b1, w2, b2)
    out = jax.block_until_ready(out)

    ref = _reference(x, w1, b1, w2, b2)
    assert out.shape == (batch, num_classes)
    assert jnp.allclose(out, ref, atol=1e-4, rtol=1e-4), "mismatch vs bf16/f32 reference"
    assert jnp.allclose(jnp.sum(out, axis=-1), 1.0, atol=1e-5), "softmax rows must sum to 1"

    print("KERNEL_OK")
</pallas_src>

<mosaic_0001>
module attributes {stable_mosaic.version = 11 : i64} {
  func.func @_classifier_kernel(%arg0: i32, %arg1: memref<16x768xbf16, #tpu.memory_space<vmem>>, %arg2: memref<768x128xbf16, #tpu.memory_space<vmem>>, %arg3: memref<128x4xbf16, #tpu.memory_space<vmem>>, %arg4: memref<2x128xf32, #tpu.memory_space<vmem>>, %arg5: memref<16x4xf32, #tpu.memory_space<vmem>>) attributes {dimension_semantics = [#tpu.dimension_semantics<parallel>], iteration_bounds = array<i64: 1>, scalar_prefetch = 0 : i64, scratch_operands = 0 : i64, tpu.core_type = #tpu.core_type<tc>, window_params = [{transform_indices = @transform_0, window_bounds = array<i64: 16, 768>}, {pipeline_mode = #tpu.pipeline_mode<synchronous>, transform_indices = @transform_1, window_bounds = array<i64: 768, 128>}, {pipeline_mode = #tpu.pipeline_mode<synchronous>, transform_indices = @transform_2, window_bounds = array<i64: 128, 4>}, {pipeline_mode = #tpu.pipeline_mode<synchronous>, transform_indices = @transform_3, window_bounds = array<i64: 2, 128>}, {transform_indices = @transform_4, window_bounds = array<i64: 16, 4>}]} {
    %c0 = arith.constant 0 : index
    %c0_0 = arith.constant 0 : index
    %0 = vector.load %arg1[%c0, %c0_0] : memref<16x768xbf16, #tpu.memory_space<vmem>>, vector<16x768xbf16>
    %c0_1 = arith.constant 0 : index
    %c0_2 = arith.constant 0 : index
    %1 = vector.load %arg2[%c0_1, %c0_2] : memref<768x128xbf16, #tpu.memory_space<vmem>>, vector<768x128xbf16>
    %cst = arith.constant dense<0.000000e+00> : vector<16x128xf32>
    %2 = tpu.matmul %0, %1, %cst {dimension_numbers = #tpu.dot_dimension_numbers<[1], [0], [0], [1], [0, 0, 1, 1], [], []>} : vector<16x768xbf16>, vector<768x128xbf16>, vector<16x128xf32> -> vector<16x128xf32>
    %c0_3 = arith.constant 0 : index
    %c0_4 = arith.constant 0 : index
    %3 = vector.load %arg4[%c0_3, %c0_4] : memref<2x128xf32, #tpu.memory_space<vmem>>, vector<1x128xf32>
    %4 = vector.broadcast %3 : vector<1x128xf32> to vector<16x128xf32>
    %5 = arith.addf %2, %4 : vector<16x128xf32>
    %6 = math.tanh %5 : vector<16x128xf32>
    %7 = arith.truncf %6 : vector<16x128xf32> to vector<16x128xbf16>
    %c0_5 = arith.constant 0 : index
    %c0_6 = arith.constant 0 : index
    %8 = vector.load %arg3[%c0_5, %c0_6] : memref<128x4xbf16, #tpu.memory_space<vmem>>, vector<128x4xbf16>
    %cst_7 = arith.constant dense<0.000000e+00> : vector<16x4xf32>
    %9 = tpu.matmul %7, %8, %cst_7 {dimension_numbers = #tpu.dot_dimension_numbers<[1], [0], [0], [1], [0, 0, 1, 1], [], []>} : vector<16x128xbf16>, vector<128x4xbf16>, vector<16x4xf32> -> vector<16x4xf32>
    %c1 = arith.constant 1 : index
    %c0_8 = arith.constant 0 : index
    %10 = vector.load %arg4[%c1, %c0_8] : memref<2x128xf32, #tpu.memory_space<vmem>>, vector<1x4xf32>
    %11 = vector.broadcast %10 : vector<1x4xf32> to vector<16x4xf32>
    %12 = arith.addf %9, %11 : vector<16x4xf32>
    %cst_9 = arith.constant dense<0xFF800000> : vector<16xf32>
    %13 = vector.multi_reduction <maximumf>, %12, %cst_9 [1] : vector<16x4xf32> to vector<16xf32>
    %14 = vector.shape_cast %13 : vector<16xf32> to vector<16x1xf32>
    %15 = vector.broadcast %14 : vector<16x1xf32> to vector<16x4xf32>
    %16 = arith.subf %12, %15 : vector<16x4xf32>
    %17 = math.exp %16 : vector<16x4xf32>
    %cst_10 = arith.constant dense<0.000000e+00> : vector<16xf32>
    %18 = vector.multi_reduction <add>, %17, %cst_10 [1] : vector<16x4xf32> to vector<16xf32>
    %19 = vector.shape_cast %18 : vector<16xf32> to vector<16x1xf32>
    %20 = tpu.reciprocal %19 : vector<16x1xf32> -> vector<16x1xf32>
    %21 = vector.broadcast %20 : vector<16x1xf32> to vector<16x4xf32>
    %22 = arith.mulf %17, %21 : vector<16x4xf32>
    %c0_11 = arith.constant 0 : index
    %c0_12 = arith.constant 0 : index
    %23 = vector.load %arg5[%c0_11, %c0_12] : memref<16x4xf32, #tpu.memory_space<vmem>>, vector<16x4xf32>
    tpu.vector_store %arg5[%c0_11, %c0_12], %22 {strides = array<i32>} : memref<16x4xf32, #tpu.memory_space<vmem>>, vector<16x4xf32>,
    return
  }
  func.func @transform_0(%arg0: i32) -> (i32, i32) {
    %c0_i32 = arith.constant 0 : i32
    %c0_i32_0 = arith.constant 0 : i32
    return %arg0, %c0_i32 : i32, i32
  }
  func.func @transform_1(%arg0: i32) -> (i32, i32) {
    %c0_i32 = arith.constant 0 : i32
    %c0_i32_0 = arith.constant 0 : i32
    %c0_i32_1 = arith.constant 0 : i32
    return %c0_i32, %c0_i32_0 : i32, i32
  }
  func.func @transform_2(%arg0: i32) -> (i32, i32) {
    %c0_i32 = arith.constant 0 : i32
    %c0_i32_0 = arith.constant 0 : i32
    %c0_i32_1 = arith.constant 0 : i32
    return %c0_i32, %c0_i32_0 : i32, i32
  }
  func.func @transform_3(%arg0: i32) -> (i32, i32) {
    %c0_i32 = arith.constant 0 : i32
    %c0_i32_0 = arith.constant 0 : i32
    %c0_i32_1 = arith.constant 0 : i32
    return %c0_i32, %c0_i32_0 : i32, i32
  }
  func.func @transform_4(%arg0: i32) -> (i32, i32) {
    %c0_i32 = arith.constant 0 : i32
    %c0_i32_0 = arith.constant 0 : i32
    return %arg0, %c0_i32 : i32, i32
  }
}

</mosaic_0001>

<llo_original>
// kernel: tpu_custom_call.1
$region0: #{tpu_custom_call.1}
  #allocation0 [shape = 'u32[]', space=smem, size = 0x4, offset = 0x4, fixed_abs, tag = 'smem constant byte address 0x4 - core index']
  #allocation1 [shape = 'u32[144,128]{1,0:T(1,128)}', space=vmem, size = 0x12000, scoped, tag = 'internal scratch']
  %s0 = inlined_call_operand.vmem [shape: bf16[16,768], index: 0, kind: input, shape index: {}]
  %s1 = inlined_call_operand.hbm [shape: bf16[768,128], index: 1, kind: input, shape index: {}]
  %s2 = inlined_call_operand.vmem [shape: bf16[128,4], index: 2, kind: input, shape index: {}]
  %s3 = inlined_call_operand.vmem [shape: f32[2,128], index: 3, kind: input, shape index: {}]
  %s4 = inlined_call_operand.vmem [shape: f32[16,4], index: 4, kind: output, shape index: {}]
  %s5 = sld [smem:[#allocation0]]
  $region30: #{tpu_custom_call.1} parent=0
    _
  %s7 = ssub.s32 1, %s5
  %s8 = scalar_select 0, %s7, %s5
  $region1: #{tpu_custom_call.1} parent=0
    #allocation2 [shape = 'u8[196608]{0}', space=vmem, size = 0x30000, scoped, tag = 'input window, operand 1, single buffered']
    #allocation3 [shape = 's32[1]{0}', space=sflag, size = 0x4, scoped, tag = 'scoped memory for tpu_custom_call.1']
    %9 = vsyncpa [#allocation3], 0
    // Predicated region
    $region2: #{tpu_custom_call.1} parent=1 // pred_check
      _
    $region3: #{tpu_custom_call.1} parent=1 // pred_check_branch
      %11 = sbr.rel (0) target = $region5
    $region4: #{tpu_custom_call.1} parent=1 // pred_region
      _
    $region5: #{tpu_custom_call.1} parent=1 // pred_fallthru
      _
    // Predicated region
    $region6: #{tpu_custom_call.1} parent=1 // pred_check
      _
    $region7: #{tpu_custom_call.1} parent=1 // pred_check_branch
      %13 = sbr.rel (0) target = $region9
    $region8: #{tpu_custom_call.1} parent=1 // pred_region
      %s15 = ssub.s32 6144, 6144
      %16 = vsyncadd [#allocation3], %s15
      %s17 = sshll.u32 [#allocation2], 4
      %s18 = int_to_ptr.vmem [resolvable:$true] %s17
      %23 = dma.hbm_to_vmem [thread:$0]  %s1, 6144, %s18, [#allocation3], 64, 64, 4
    $region9: #{tpu_custom_call.1} parent=1 // pred_fallthru
      _
    // Predicated region
    $region10: #{tpu_custom_call.1} parent=1 // pred_check
      _
    $region11: #{tpu_custom_call.1} parent=1 // pred_check_branch
      %25 = sbr.rel (0) target = $region13
    $region12: #{tpu_custom_call.1} parent=1 // pred_region
      _
    $region13: #{tpu_custom_call.1} parent=1 // pred_fallthru
      _
    // Predicated region
    $region14: #{tpu_custom_call.1} parent=1 // pred_check
      _
    $region15: #{tpu_custom_call.1} parent=1 // pred_check_branch
      %27 = sbr.rel (0) target = $region17
    $region16: #{tpu_custom_call.1} parent=1 // pred_region
      _
    $region17: #{tpu_custom_call.1} parent=1 // pred_fallthru
      _
    // Predicated region
    $region18: #{tpu_custom_call.1} parent=1 // pred_check
      _
    $region19: #{tpu_custom_call.1} parent=1 // pred_check_branch
      %29 = sbr.rel (0) target = $region21
    $region20: #{tpu_custom_call.1} parent=1 // pred_region
      %30 = dma.done [#allocation3], 6144
    $region21: #{tpu_custom_call.1} parent=1 // pred_fallthru
      _
    %v32 = vld [vmem:[%s0] sm:$0xff]
    %v33 = vld [vmem:[%s0 + $0x8] sm:$0xff]
    %v34 = vld [vmem:[%s0 + $0x10] sm:$0xff]
    %v35 = vld [vmem:[%s0 + $0x18] sm:$0xff]
    %v36 = vld [vmem:[%s0 + $0x20] sm:$0xff]
    %v37 = vld [vmem:[%s0 + $0x28] sm:$0xff]
    %v38 = vld [vmem:[#allocation2] sm:$0xf]
    %v39 = vld [vmem:[#allocation2 + $0x4] sm:$0xf]
    %v40 = vld [vmem:[#allocation2 + $0x8] sm:$0xf]
    %v41 = vld [vmem:[#allocation2 + $0xc] sm:$0xf]
    %v42 = vld [vmem:[#allocation2 + $0x10] sm:$0xf]
    %v43 = vld [vmem:[#allocation2 + $0x14] sm:$0xf]
    %v44 = vld [vmem:[#allocation2 + $0x18] sm:$0xf]
    %v45 = vld [vmem:[#allocation2 + $0x1c] sm:$0xf]
    %v46 = vld [vmem:[#allocation2 + $0x20] sm:$0xf]
    %v47 = vld [vmem:[#allocation2 + $0x24] sm:$0xf]
    %v48 = vld [vmem:[#allocation2 + $0x28] sm:$0xf]
    %v49 = vld [vmem:[#allocation2 + $0x2c] sm:$0xf]
    %v50 = vld [vmem:[#allocation2 + $0x30] sm:$0xf]
    %v51 = vld [vmem:[#allocation2 + $0x34] sm:$0xf]
    %v52 = vld [vmem:[#allocation2 + $0x38] sm:$0xf]
    %v53 = vld [vmem:[#allocation2 + $0x3c] sm:$0xf]
    %v54 = vld [vmem:[#allocation2 + $0x40] sm:$0xf]
    %v55 = vld [vmem:[#allocation2 + $0x44] sm:$0xf]
    %v56 = vld [vmem:[#allocation2 + $0x48] sm:$0xf]
    %v57 = vld [vmem:[#allocation2 + $0x4c] sm:$0xf]
    %v58 = vld [vmem:[#allocation2 + $0x50] sm:$0xf]
    %v59 = vld [vmem:[#allocation2 + $0x54] sm:$0xf]
    %v60 = vld [vmem:[#allocation2 + $0x58] sm:$0xf]
    %v61 = vld [vmem:[#allocation2 + $0x5c] sm:$0xf]
    %v62 = vld [vmem:[#allocation2 + $0x60] sm:$0xf]
    %v63 = vld [vmem:[#allocation2 + $0x64] sm:$0xf]
    %v64 = vld [vmem:[#allocation2 + $0x68] sm:$0xf]
    %v65 = vld [vmem:[#allocation2 + $0x6c] sm:$0xf]
    %v66 = vld [vmem:[#allocation2 + $0x70] sm:$0xf]
    %v67 = vld [vmem:[#allocation2 + $0x74] sm:$0xf]
    %v68 = vld [vmem:[#allocation2 + $0x78] sm:$0xf]
    %v69 = vld [vmem:[#allocation2 + $0x7c] sm:$0xf]
    %v70 = vld [vmem:[#allocation2 + $0x80] sm:$0xf]
    %v71 = vld [vmem:[#allocation2 + $0x84] sm:$0xf]
    %v72 = vld [vmem:[#allocation2 + $0x88] sm:$0xf]
    %v73 = vld [vmem:[#allocation2 + $0x8c] sm:$0xf]
    %v74 = vld [vmem:[#allocation2 + $0x90] sm:$0xf]
    %v75 = vld [vmem:[#allocation2 + $0x94] sm:$0xf]
    %v76 = vld [vmem:[#allocation2 + $0x98] sm:$0xf]
    %v77 = vld [vmem:[#allocation2 + $0x9c] sm:$0xf]
    %v78 = vld [vmem:[#allocation2 + $0xa0] sm:$0xf]
    %v79 = vld [vmem:[#allocation2 + $0xa4] sm:$0xf]
    %v80 = vld [vmem:[#allocation2 + $0xa8] sm:$0xf]
    %v81 = vld [vmem:[#allocation2 + $0xac] sm:$0xf]
    %v82 = vld [vmem:[#allocation2 + $0xb0] sm:$0xf]
    %v83 = vld [vmem:[#allocation2 + $0xb4] sm:$0xf]
    %v84 = vld [vmem:[#allocation2 + $0xb8] sm:$0xf]
    %v85 = vld [vmem:[#allocation2 + $0xbc] sm:$0xf]
    %v86 = vld [vmem:[#allocation2 + $0xc0] sm:$0xf]
    %v87 = vld [vmem:[#allocation2 + $0xc4] sm:$0xf]
    %v88 = vld [vmem:[#allocation2 + $0xc8] sm:$0xf]
    %v89 = vld [vmem:[#allocation2 + $0xcc] sm:$0xf]
    %v90 = vld [vmem:[#allocation2 + $0xd0] sm:$0xf]
    %v91 = vld [vmem:[#allocation2 + $0xd4] sm:$0xf]
    %v92 = vld [vmem:[#allocation2 + $0xd8] sm:$0xf]
    %v93 = vld [vmem:[#allocation2 + $0xdc] sm:$0xf]
    %v94 = vld [vmem:[#allocation2 + $0xe0] sm:$0xf]
    %v95 = vld [vmem:[#allocation2 + $0xe4] sm:$0xf]
    %v96 = vld [vmem:[#allocation2 + $0xe8] sm:$0xf]
    %v97 = vld [vmem:[#allocation2 + $0xec] sm:$0xf]
    %v98 = vld [vmem:[#allocation2 + $0xf0] sm:$0xf]
    %v99 = vld [vmem:[#allocation2 + $0xf4] sm:$0xf]
    %v100 = vld [vmem:[#allocation2 + $0xf8] sm:$0xf]
    %v101 = vld [vmem:[#allocation2 + $0xfc] sm:$0xf]
    %v102 = vld [vmem:[#allocation2 + $0x100] sm:$0xf]
    %v103 = vld [vmem:[#allocation2 + $0x104] sm:$0xf]
    %v104 = vld [vmem:[#allocation2 + $0x108] sm:$0xf]
    %v105 = vld [vmem:[#allocation2 + $0x10c] sm:$0xf]
    %v106 = vld [vmem:[#allocation2 + $0x110] sm:$0xf]
    %v107 = vld [vmem:[#allocation2 + $0x114] sm:$0xf]
    %v108 = vld [vmem:[#allocation2 + $0x118] sm:$0xf]
    %v109 = vld [vmem:[#allocation2 + $0x11c] sm:$0xf]
    %v110 = vld [vmem:[#allocation2 + $0x120] sm:$0xf]
    %v111 = vld [vmem:[#allocation2 + $0x124] sm:$0xf]
    %v112 = vld [vmem:[#allocation2 + $0x128] sm:$0xf]
    %v113 = vld [vmem:[#allocation2 + $0x12c] sm:$0xf]
    %v114 = vld [vmem:[#allocation2 + $0x130] sm:$0xf]
    %v115 = vld [vmem:[#allocation2 + $0x134] sm:$0xf]
    %v116 = vld [vmem:[#allocation2 + $0x138] sm:$0xf]
    %v117 = vld [vmem:[#allocation2 + $0x13c] sm:$0xf]
    %v118 = vld [vmem:[#allocation2 + $0x140] sm:$0xf]
    %v119 = vld [vmem:[#allocation2 + $0x144] sm:$0xf]
    %v120 = vld [vmem:[#allocation2 + $0x148] sm:$0xf]
    %v121 = vld [vmem:[#allocation2 + $0x14c] sm:$0xf]
    %v122 = vld [vmem:[#allocation2 + $0x150] sm:$0xf]
    %v123 = vld [vmem:[#allocation2 + $0x154] sm:$0xf]
    %v124 = vld [vmem:[#allocation2 + $0x158] sm:$0xf]
    %v125 = vld [vmem:[#allocation2 + $0x15c] sm:$0xf]
    %v126 = vld [vmem:[#allocation2 + $0x160] sm:$0xf]
    %v127 = vld [vmem:[#allocation2 + $0x164] sm:$0xf]
    %v128 = vld [vmem:[#allocation2 + $0x168] sm:$0xf]
    %v129 = vld [vmem:[#allocation2 + $0x16c] sm:$0xf]
    %v130 = vld [vmem:[#allocation2 + $0x170] sm:$0xf]
    %v131 = vld [vmem:[#allocation2 + $0x174] sm:$0xf]
    %v132 = vld [vmem:[#allocation2 + $0x178] sm:$0xf]
    %v133 = vld [vmem:[#allocation2 + $0x17c] sm:$0xf]
    %v134 = vld [vmem:[%s3] sm:$0x1]
    %v135 = vlaneseq
    %v136 = vshrl.u32 %v135, 7
    %v137 = vsub.s32 0, %v136
    %v138 = vrot.slane %v134, %v137
    %v145 = vunpack.c.l.b16 %v32
    %v146 = vunpack.c.h.b16 %v32
    %v147 = vunpack.c.l.b16 %v33
    %v148 = vunpack.c.h.b16 %v33
    %v149 = vunpack.c.l.b16 %v34
    %v150 = vunpack.c.h.b16 %v34
    %v151 = vunpack.c.l.b16 %v35
    %v152 = vunpack.c.h.b16 %v35
    %v153 = vunpack.c.l.b16 %v36
    %v154 = vunpack.c.h.b16 %v36
    %v155 = vunpack.c.l.b16 %v37
    %v156 = vunpack.c.h.b16 %v37
    %v157 = vpack.c.b16 %v151, %v145
    %v158 = vpack.c.b16 %v152, %v146
    %v159 = vpack.c.b16 %v153, %v147
    %v160 = vpack.c.b16 %v154, %v148
    %v161 = vpack.c.b16 %v155, %v149
    %v162 = vpack.c.b16 %v156, %v150
    %v265 = vunpack.c.l.b16 %v38
    %v266 = vunpack.c.l.b16 %v39
    %v267 = vunpack.c.l.b16 %v40
    %v268 = vunpack.c.l.b16 %v41
    %v269 = vunpack.c.l.b16 %v42
    %v270 = vunpack.c.l.b16 %v43
    %v271 = vunpack.c.l.b16 %v44
    %v272 = vunpack.c.l.b16 %v45
    %v273 = vunpack.c.l.b16 %v46
    %v274 = vunpack.c.l.b16 %v47
    %v275 = vunpack.c.l.b16 %v48
    %v276 = vunpack.c.l.b16 %v49
    %v277 = vunpack.c.l.b16 %v50
    %v278 = vunpack.c.l.b16 %v51
    %v279 = vunpack.c.l.b16 %v52
    %v280 = vunpack.c.l.b16 %v53
    %v281 = vunpack.c.l.b16 %v54
    %v282 = vunpack.c.l.b16 %v55
    %v283 = vunpack.c.l.b16 %v56
    %v284 = vunpack.c.l.b16 %v57
    %v285 = vunpack.c.l.b16 %v58
    %v286 = vunpack.c.l.b16 %v59
    %v287 = vunpack.c.l.b16 %v60
    %v288 = vunpack.c.l.b16 %v61
    %v289 = vunpack.c.l.b16 %v62
    %v290 = vunpack.c.l.b16 %v63
    %v291 = vunpack.c.l.b16 %v64
    %v292 = vunpack.c.l.b16 %v65
    %v293 = vunpack.c.l.b16 %v66
    %v294 = vunpack.c.l.b16 %v67
    %v295 = vunpack.c.l.b16 %v68
    %v296 = vunpack.c.l.b16 %v69
    %v297 = vunpack.c.l.b16 %v70
    %v298 = vunpack.c.l.b16 %v71
    %v299 = vunpack.c.l.b16 %v72
    %v300 = vunpack.c.l.b16 %v73
    %v301 = vunpack.c.l.b16 %v74
    %v302 = vunpack.c.l.b16 %v75
    %v303 = vunpack.c.l.b16 %v76
    %v304 = vunpack.c.l.b16 %v77
    %v305 = vunpack.c.l.b16 %v78
    %v306 = vunpack.c.l.b16 %v79
    %v307 = vunpack.c.l.b16 %v80
    %v308 = vunpack.c.l.b16 %v81
    %v309 = vunpack.c.l.b16 %v82
    %v310 = vunpack.c.l.b16 %v83
    %v311 = vunpack.c.l.b16 %v84
    %v312 = vunpack.c.l.b16 %v85
    %v313 = vunpack.c.l.b16 %v86
    %v314 = vunpack.c.l.b16 %v87
    %v315 = vunpack.c.l.b16 %v88
    %v316 = vunpack.c.l.b16 %v89
    %v317 = vunpack.c.l.b16 %v90
    %v318 = vunpack.c.l.b16 %v91
    %v319 = vunpack.c.l.b16 %v92
    %v320 = vunpack.c.l.b16 %v93
    %v321 = vunpack.c.l.b16 %v94
    %v322 = vunpack.c.l.b16 %v95
    %v323 = vunpack.c.l.b16 %v96
    %v324 = vunpack.c.l.b16 %v97
    %v325 = vunpack.c.l.b16 %v98
    %v326 = vunpack.c.l.b16 %v99
    %v327 = vunpack.c.l.b16 %v100
    %v328 = vunpack.c.l.b16 %v101
    %v329 = vunpack.c.l.b16 %v102
    %v330 = vunpack.c.l.b16 %v103
    %v331 = vunpack.c.l.b16 %v104
    %v332 = vunpack.c.l.b16 %v105
    %v333 = vunpack.c.l.b16 %v106
    %v334 = vunpack.c.l.b16 %v107
    %v335 = vunpack.c.l.b16 %v108
    %v336 = vunpack.c.l.b16 %v109
    %v337 = vunpack.c.l.b16 %v110
    %v338 = vunpack.c.l.b16 %v111
    %v339 = vunpack.c.l.b16 %v112
    %v340 = vunpack.c.l.b16 %v113
    %v341 = vunpack.c.l.b16 %v114
    %v342 = vunpack.c.l.b16 %v115
    %v343 = vunpack.c.l.b16 %v116
    %v344 = vunpack.c.l.b16 %v117
    %v345 = vunpack.c.l.b16 %v118
    %v346 = vunpack.c.l.b16 %v119
    %v347 = vunpack.c.l.b16 %v120
    %v348 = vunpack.c.l.b16 %v121
    %v349 = vunpack.c.l.b16 %v122
    %v350 = vunpack.c.l.b16 %v123
    %v351 = vunpack.c.l.b16 %v124
    %v352 = vunpack.c.l.b16 %v125
    %v353 = vunpack.c.l.b16 %v126
    %v354 = vunpack.c.l.b16 %v127
    %v355 = vunpack.c.l.b16 %v128
    %v356 = vunpack.c.l.b16 %v129
    %v357 = vunpack.c.l.b16 %v130
    %v358 = vunpack.c.l.b16 %v131
    %v359 = vunpack.c.l.b16 %v132
    %v360 = vunpack.c.l.b16 %v133
    %v361 = vpack.c.b16 %v266, %v265
    %v362 = vpack.c.b16 %v268, %v267
    %v363 = vpack.c.b16 %v270, %v269
    %v364 = vpack.c.b16 %v272, %v271
    %v365 = vpack.c.b16 %v274, %v273
    %v366 = vpack.c.b16 %v276, %v275
    %v367 = vpack.c.b16 %v278, %v277
    %v368 = vpack.c.b16 %v280, %v279
    %v369 = vpack.c.b16 %v282, %v281
    %v370 = vpack.c.b16 %v284, %v283
    %v371 = vpack.c.b16 %v286, %v285
    %v372 = vpack.c.b16 %v288, %v287
    %v373 = vpack.c.b16 %v290, %v289
    %v374 = vpack.c.b16 %v292, %v291
    %v375 = vpack.c.b16 %v294, %v293
    %v376 = vpack.c.b16 %v296, %v295
    %v377 = vpack.c.b16 %v298, %v297
    %v378 = vpack.c.b16 %v300, %v299
    %v379 = vpack.c.b16 %v302, %v301
    %v380 = vpack.c.b16 %v304, %v303
    %v381 = vpack.c.b16 %v306, %v305
    %v382 = vpack.c.b16 %v308, %v307
    %v383 = vpack.c.b16 %v310, %v309
    %v384 = vpack.c.b16 %v312, %v311
    %v385 = vpack.c.b16 %v314, %v313
    %v386 = vpack.c.b16 %v316, %v315
    %v387 = vpack.c.b16 %v318, %v317
    %v388 = vpack.c.b16 %v320, %v319
    %v389 = vpack.c.b16 %v322, %v321
    %v390 = vpack.c.b16 %v324, %v323
    %v391 = vpack.c.b16 %v326, %v325
    %v392 = vpack.c.b16 %v328, %v327
    %v393 = vpack.c.b16 %v330, %v329
    %v394 = vpack.c.b16 %v332, %v331
    %v395 = vpack.c.b16 %v334, %v333
    %v396 = vpack.c.b16 %v336, %v335
    %v397 = vpack.c.b16 %v338, %v337
    %v398 = vpack.c.b16 %v340, %v339
    %v399 = vpack.c.b16 %v342, %v341
    %v400 = vpack.c.b16 %v344, %v343
    %v401 = vpack.c.b16 %v346, %v345
    %v402 = vpack.c.b16 %v348, %v347
    %v403 = vpack.c.b16 %v350, %v349
    %v404 = vpack.c.b16 %v352, %v351
    %v405 = vpack.c.b16 %v354, %v353
    %v406 = vpack.c.b16 %v356, %v355
    %v407 = vpack.c.b16 %v358, %v357
    %v408 = vpack.c.b16 %v360, %v359
    %457 = vmatprep.subr.bf16.mxu0 0
    %458 = vmatpush1.bf16.msra.mxu0 %v368
    %459 = vmatprep.subr.bf16.mxu0 0
    %460 = vmatpush1.bf16.msra.mxu0 %v367
    %461 = vmatprep.subr.bf16.mxu0 0
    %462 = vmatpush1.bf16.msra.mxu0 %v366
    %463 = vmatprep.subr.bf16.mxu0 0
    %464 = vmatpush1.bf16.msra.mxu0 %v365
    %465 = vmatprep.subr.bf16.mxu0 0
    %466 = vmatpush1.bf16.msra.mxu0 %v364
    %467 = vmatprep.subr.bf16.mxu0 0
    %468 = vmatpush1.bf16.msra.mxu0 %v363
    %469 = vmatprep.subr.bf16.mxu0 0
    %470 = vmatpush1.bf16.msra.mxu0 %v362
    %471 = vmatprep.subr.bf16.mxu0 0
    %472 = vmatpush1.bf16.msra.mxu0 %v361
    %473 = vmatprep.subr.bf16.mxu0 0
    %474 = vmatpush2.bf16.msra.mxu0 %v376
    %475 = vmatprep.subr.bf16.mxu0 0
    %476 = vmatpush2.bf16.msra.mxu0 %v375
    %477 = vmatprep.subr.bf16.mxu0 0
    %478 = vmatpush2.bf16.msra.mxu0 %v374
    %479 = vmatprep.subr.bf16.mxu0 0
    %480 = vmatpush2.bf16.msra.mxu0 %v373
    %481 = vmatprep.subr.bf16.mxu0 0
    %482 = vmatpush2.bf16.msra.mxu0 %v372
    %483 = vmatprep.subr.bf16.mxu0 0
    %484 = vmatpush2.bf16.msra.mxu0 %v371
    %485 = vmatprep.subr.bf16.mxu0 0
    %486 = vmatpush2.bf16.msra.mxu0 %v370
    %487 = vmatprep.subr.bf16.mxu0 0
    %488 = vmatpush2.bf16.msra.mxu0 %v369
    %489 = vmatprep.mubr.bf16.mxu0 %v158
    %490 = vmatmul.mubr.bf16.gmra.mxu0 %v157
    %v491 = vpop.f32.mrf.mxu0
    %v492 = vadd.f32 %v138, %v491
    %v493 = vpop.f32.mrf.mxu0
    %v494 = vpop.f32.mrf.mxu0
    %v495 = vadd.f32 %v138, %v494
    %v496 = vpop.f32.mrf.mxu0
    %497 = vdwg.mxu0
    %498 = vmatprep.subr.bf16.mxu0 0
    %499 = vmatpush1.bf16.msra.mxu0 %v384
    %500 = vmatprep.subr.bf16.mxu0 0
    %501 = vmatpush1.bf16.msra.mxu0 %v383
    %502 = vmatprep.subr.bf16.mxu0 0
    %503 = vmatpush1.bf16.msra.mxu0 %v382
    %504 = vmatprep.subr.bf16.mxu0 0
    %505 = vmatpush1.bf16.msra.mxu0 %v381
    %506 = vmatprep.subr.bf16.mxu0 0
    %507 = vmatpush1.bf16.msra.mxu0 %v380
    %508 = vmatprep.subr.bf16.mxu0 0
    %509 = vmatpush1.bf16.msra.mxu0 %v379
    %510 = vmatprep.subr.bf16.mxu0 0
    %511 = vmatpush1.bf16.msra.mxu0 %v378
    %512 = vmatprep.subr.bf16.mxu0 0
    %513 = vmatpush1.bf16.msra.mxu0 %v377
    %514 = vmatprep.subr.bf16.mxu0 0
    %515 = vmatpush2.bf16.msra.mxu0 %v392
    %516 = vmatprep.subr.bf16.mxu0 0
    %517 = vmatpush2.bf16.msra.mxu0 %v391
    %518 = vmatprep.subr.bf16.mxu0 0
    %519 = vmatpush2.bf16.msra.mxu0 %v390
    %520 = vmatprep.subr.bf16.mxu0 0
    %521 = vmatpush2.bf16.msra.mxu0 %v389
    %522 = vmatprep.subr.bf16.mxu0 0
    %523 = vmatpush2.bf16.msra.mxu0 %v388
    %524 = vmatprep.subr.bf16.mxu0 0
    %525 = vmatpush2.bf16.msra.mxu0 %v387
    %526 = vmatprep.subr.bf16.mxu0 0
    %527 = vmatpush2.bf16.msra.mxu0 %v386
    %528 = vmatprep.subr.bf16.mxu0 0
    %529 = vmatpush2.bf16.msra.mxu0 %v385
    %530 = vmatprep.mubr.bf16.mxu0 %v160
    %531 = vmatmul.mubr.bf16.gmra.mxu0 %v159
    %v532 = vpop.f32.mrf.mxu0
    %v533 = vadd.f32 %v492, %v532
    %v534 = vpop.f32.mrf.mxu0
    %v535 = vpop.f32.mrf.mxu0
    %v536 = vadd.f32 %v495, %v535
    %v537 = vpop.f32.mrf.mxu0
    %538 = vdwg.mxu0
    %539 = vmatprep.subr.bf16.mxu0 0
    %540 = vmatpush1.bf16.msra.mxu0 %v400
    %541 = vmatprep.subr.bf16.mxu0 0
    %542 = vmatpush1.bf16.msra.mxu0 %v399
    %543 = vmatprep.subr.bf16.mxu0 0
    %544 = vmatpush1.bf16.msra.mxu0 %v398
    %545 = vmatprep.subr.bf16.mxu0 0
    %546 = vmatpush1.bf16.msra.mxu0 %v397
    %547 = vmatprep.subr.bf16.mxu0 0
    %548 = vmatpush1.bf16.msra.mxu0 %v396
    %549 = vmatprep.subr.bf16.mxu0 0
    %550 = vmatpush1.bf16.msra.mxu0 %v395
    %551 = vmatprep.subr.bf16.mxu0 0
    %552 = vmatpush1.bf16.msra.mxu0 %v394
    %553 = vmatprep.subr.bf16.mxu0 0
    %554 = vmatpush1.bf16.msra.mxu0 %v393
    %555 = vmatprep.subr.bf16.mxu0 0
    %556 = vmatpush2.bf16.msra.mxu0 %v408
    %557 = vmatprep.subr.bf16.mxu0 0
    %558 = vmatpush2.bf16.msra.mxu0 %v407
    %559 = vmatprep.subr.bf16.mxu0 0
    %560 = vmatpush2.bf16.msra.mxu0 %v406
    %561 = vmatprep.subr.bf16.mxu0 0
    %562 = vmatpush2.bf16.msra.mxu0 %v405
    %563 = vmatprep.subr.bf16.mxu0 0
    %564 = vmatpush2.bf16.msra.mxu0 %v404
    %565 = vmatprep.subr.bf16.mxu0 0
    %566 = vmatpush2.bf16.msra.mxu0 %v403
    %567 = vmatprep.subr.bf16.mxu0 0
    %568 = vmatpush2.bf16.msra.mxu0 %v402
    %569 = vmatprep.subr.bf16.mxu0 0
    %570 = vmatpush2.bf16.msra.mxu0 %v401
    %571 = vmatprep.mubr.bf16.mxu0 %v162
    %572 = vmatmul.mubr.bf16.gmra.mxu0 %v161
    %v573 = vpop.f32.mrf.mxu0
    %v574 = vadd.f32 %v533, %v573
    %v575 = vpop.f32.mrf.mxu0
    %v576 = vpop.f32.mrf.mxu0
    %v577 = vadd.f32 %v536, %v576
    %v578 = vpop.f32.mrf.mxu0
    %579 = vdwg.mxu0
    %v580 = vtanh.pop %v574
    %v581 = vtanh.pop %v577
    %v582 = vpack.c.bf16 %v581, %v580
    %v583 = vld [vmem:[%s2] sm:$0xf]
    %v584 = vld [vmem:[%s2 + $0x4] sm:$0xf]
    %v585 = vld [vmem:[%s2 + $0x8] sm:$0xf]
    %v586 = vld [vmem:[%s2 + $0xc] sm:$0xf]
    %v587 = vld [vmem:[%s2 + $0x10] sm:$0xf]
    %v588 = vld [vmem:[%s2 + $0x14] sm:$0xf]
    %v589 = vld [vmem:[%s2 + $0x18] sm:$0xf]
    %v590 = vld [vmem:[%s2 + $0x1c] sm:$0xf]
    %v591 = vld [vmem:[%s2 + $0x20] sm:$0xf]
    %v592 = vld [vmem:[%s2 + $0x24] sm:$0xf]
    %v593 = vld [vmem:[%s2 + $0x28] sm:$0xf]
    %v594 = vld [vmem:[%s2 + $0x2c] sm:$0xf]
    %v595 = vld [vmem:[%s2 + $0x30] sm:$0xf]
    %v596 = vld [vmem:[%s2 + $0x34] sm:$0xf]
    %v597 = vld [vmem:[%s2 + $0x38] sm:$0xf]
    %v598 = vld [vmem:[%s2 + $0x3c] sm:$0xf]
    %v599 = vld [vmem:[%s3 + $0x1] sm:$0x1]
    %v600 = vlaneseq
    %v601 = vshrl.u32 %v600, 7
    %v602 = vsub.s32 0, %v601
    %v603 = vrot.slane %v599, %v602
    %v620 = vunpack.c.l.b16 %v583
    %v621 = vunpack.c.l.b16 %v584
    %v622 = vunpack.c.l.b16 %v585
    %v623 = vunpack.c.l.b16 %v586
    %v624 = vunpack.c.l.b16 %v587
    %v625 = vunpack.c.l.b16 %v588
    %v626 = vunpack.c.l.b16 %v589
    %v627 = vunpack.c.l.b16 %v590
    %v628 = vunpack.c.l.b16 %v591
    %v629 = vunpack.c.l.b16 %v592
    %v630 = vunpack.c.l.b16 %v593
    %v631 = vunpack.c.l.b16 %v594
    %v632 = vunpack.c.l.b16 %v595
    %v633 = vunpack.c.l.b16 %v596
    %v634 = vunpack.c.l.b16 %v597
    %v635 = vunpack.c.l.b16 %v598
    %v636 = vpack.c.b16 %v621, %v620
    %v637 = vpack.c.b16 %v623, %v622
    %v638 = vpack.c.b16 %v625, %v624
    %v639 = vpack.c.b16 %v627, %v626
    %v640 = vpack.c.b16 %v629, %v628
    %v641 = vpack.c.b16 %v631, %v630
    %v642 = vpack.c.b16 %v633, %v632
    %v643 = vpack.c.b16 %v635, %v634
    %652 = vmatprep.subr.bf16.mxu0 0
    %653 = vmatpush1.bf16.msra.mxu0 %v643
    %654 = vmatprep.subr.bf16.mxu0 0
    %655 = vmatpush1.bf16.msra.mxu0 %v642
    %656 = vmatprep.subr.bf16.mxu0 0
    %657 = vmatpush1.bf16.msra.mxu0 %v641
    %658 = vmatprep.subr.bf16.mxu0 0
    %659 = vmatpush1.bf16.msra.mxu0 %v640
    %660 = vmatprep.subr.bf16.mxu0 0
    %661 = vmatpush1.bf16.msra.mxu0 %v639
    %662 = vmatprep.subr.bf16.mxu0 0
    %663 = vmatpush1.bf16.msra.mxu0 %v638
    %664 = vmatprep.subr.bf16.mxu0 0
    %665 = vmatpush1.bf16.msra.mxu0 %v637
    %666 = vmatprep.subr.bf16.mxu0 0
    %667 = vmatpush1.bf16.msra.mxu0 %v636
    %668 = vmatprep.subr.bf16.mxu0 0
    %669 = vmatpush2.bf16.msra.mxu0 0
    %670 = vmatprep.subr.bf16.mxu0 0
    %671 = vmatpush2.bf16.msra.mxu0 0
    %672 = vmatprep.subr.bf16.mxu0 0
    %673 = vmatpush2.bf16.msra.mxu0 0
    %674 = vmatprep.subr.bf16.mxu0 0
    %675 = vmatpush2.bf16.msra.mxu0 0
    %676 = vmatprep.subr.bf16.mxu0 0
    %677 = vmatpush2.bf16.msra.mxu0 0
    %678 = vmatprep.subr.bf16.mxu0 0
    %679 = vmatpush2.bf16.msra.mxu0 0
    %680 = vmatprep.subr.bf16.mxu0 0
    %681 = vmatpush2.bf16.msra.mxu0 0
    %682 = vmatprep.subr.bf16.mxu0 0
    %683 = vmatpush2.bf16.msra.mxu0 0
    %684 = vmatprep.mubr.bf16.mxu0 0
    %685 = vmatmul.mubr.bf16.gmra.mxu0 %v582
    %v686 = vpop.f32.mrf.mxu0
    %v687 = vadd.f32 %v603, %v686
    %v688 = vpop.f32.mrf.mxu0
    %v689 = vpop.f32.mrf.mxu0
    %v690 = vadd.f32 %v603, %v689
    %v691 = vpop.f32.mrf.mxu0
    %692 = vdwg.mxu0
    %vm693 = vcmask 31744
    %v694 = vsel %vm693, %v687, -inf
    %695 = vmax.xlane.f32.xlu0 %v694
    %v696 = vpop.xlane.xlu0 %695
    %v697 = vsel %vm693, %v690, -inf
    %698 = vmax.xlane.f32.xlu0 %v697
    %v699 = vpop.xlane.xlu0 %698
    %v700 = vsub.f32 %v687, %v696
    %v701 = vsub.f32 %v690, %v699
    %v702 = vmul.f32 %v700, 1.442695
    %v703 = vpow.pop %v702
    %v704 = vmul.f32 %v701, 1.442695
    %v705 = vpow.pop %v704
    %v706 = vsel %vm693, %v703, 0.0
    %707 = vadd.xlane.f32.xlu0 %v706
    %v708 = vpop.xlane.xlu0 %707
    %v709 = vsel %vm693, %v705, 0.0
    %710 = vadd.xlane.f32.xlu0 %v709
    %v711 = vpop.xlane.xlu0 %710
    %v712 = vrcp.pop %v708
    %v713 = vrcp.pop %v711
    %v714 = vmul.f32 %v703, %v712
    %v715 = vmul.f32 %v705, %v713
    %716 = vst.msk [vmem:[%s4] sm:$0xff] %vm693, %v714
    %717 = vst.msk [vmem:[%s4 + $0x8] sm:$0xff] %vm693, %v715
    // Predicated region
    $region22: #{tpu_custom_call.1} parent=1 // pred_check
      _
    $region23: #{tpu_custom_call.1} parent=1 // pred_check_branch
      %719 = sbr.rel (0) target = $region25
    $region24: #{tpu_custom_call.1} parent=1 // pred_region
      _
    $region25: #{tpu_custom_call.1} parent=1 // pred_fallthru
      _
    // Predicated region
    $region26: #{tpu_custom_call.1} parent=1 // pred_check
      _
    $region27: #{tpu_custom_call.1} parent=1 // pred_check_branch
      %721 = sbr.rel (0) target = $region29
    $region28: #{tpu_custom_call.1} parent=1 // pred_region
      _
    $region29: #{tpu_custom_call.1} parent=1 // pred_fallthru
      _
    %722 = vsyncpa [#allocation3], 1

</llo_original>
